<compile_context>
chip_gen: v6e
topology: v6e:2x2x1
jax: 0.10.0
libtpu: 0.0.40
codegen_flags: <defaults>
</compile_context>

<pallas_src>
import jax
import jax.numpy as jnp
import numpy as np
from jax.experimental import pallas as pl
from jax.experimental.pallas import tpu as pltpu


def _compose_kernel(wd_ref, ch_ref, sig_ref, ww_ref, wc_ref, ws_ref, b_ref, out_ref):
    """One row-tile of the gated composition.

    wd_ref  : (TN, D)     word embeddings
    ch_ref  : (TN, C)     full char embeddings (split handled via weight padding)
    sig_ref : (TN, Ds)    signal embeddings
    ww_ref  : (D, 2D)     fused word-gate weights   -> [gate_w | gate_c]
    wc_ref  : (C, 2D)     fused char-gate weights, rows [D:] zero-padded
    ws_ref  : (Ds, 2D)    fused signal-gate weights
    b_ref   : (1, 2D)     fused bias
    out_ref : (TN, C)     concat(gate_w*wd + gate_c*ch_left, ch_right)
    """
    D = wd_ref.shape[-1]

    wd = wd_ref[...]
    ch = ch_ref[...]

    # Three accumulated MXU dots (no lane concat, no K=5 VPU loop).
    # Zero-padded wc rows make ch_left slicing unnecessary on the matmul path.
    pre = (jnp.dot(wd, ww_ref[...], preferred_element_type=jnp.float32)
           + jnp.dot(ch, wc_ref[...], preferred_element_type=jnp.float32)
           + jnp.dot(sig_ref[...], ws_ref[...], preferred_element_type=jnp.float32)
           + b_ref[...])

    gates = jax.nn.sigmoid(pre)            # f32 elementwise (v5e has no bf16 VPU/EUP)
    gate_w = gates[:, :D]
    gate_c = gates[:, D:]

    fused = gate_w * wd.astype(jnp.float32) + gate_c * ch[:, :D].astype(jnp.float32)

    # Two direct sub-stores instead of building a (TN, C) concat temp.
    # NOTE: Pallas masks out-of-bounds tail rows at writeback; garbage tail
    # rows only pass through elementwise math, which is safe.
    out_ref[:, :D] = fused.astype(out_ref.dtype)
    out_ref[:, D:] = ch[:, D:].astype(out_ref.dtype)


def _fuse_params(params, ch_dim, act_dtype):
    """Fuse per-gate Linear weights; output axis = [gate_w | gate_c]."""
    D = params["ww0"].shape[0]
    ww = jnp.concatenate([params["ww0"], params["ww1"]], axis=1)       # (D, 2D)
    wc = jnp.concatenate([params["wc0"], params["wc1"]], axis=1)       # (D, 2D)
    wc_pad = jnp.zeros((ch_dim, 2 * D), wc.dtype).at[:D, :].set(wc)    # (C, 2D)
    ws = jnp.concatenate([params["ws0"], params["ws1"]], axis=1)       # (Ds, 2D)
    b = jnp.concatenate([params["b0"], params["b1"]], axis=1)          # (1, 2D)
    if act_dtype == jnp.bfloat16:
        # Native bf16 MXU path on v6e/v7x; bias stays f32 (added to f32 acc).
        ww, wc_pad, ws = (w.astype(jnp.bfloat16) for w in (ww, wc_pad, ws))
    return ww, wc_pad, ws, b.astype(jnp.float32)


def _round_up(x, m):
    return ((x + m - 1) // m) * m


def _block_vmem_bytes(rows, feat, dtype):
    """Lane/sublane-padded VMEM footprint of one (rows, feat) block."""
    return _round_up(rows, 8) * _round_up(feat, 128) * jnp.dtype(dtype).itemsize


def embed_compose_forward(wd_embed, ch_embed, sig_embed, params, *, tile_n=2048):
    """Full EmbedCompose forward. Inputs are (B, S, feat); output (B, S, ch_dim)."""
    B, S, D = wd_embed.shape
    C = ch_embed.shape[-1]
    Ds = sig_embed.shape[-1]
    assert C > D and C <= 2 * D, "torch .split(wd_dim) must yield exactly 2 chunks"

    N = B * S
    wd2d = wd_embed.reshape(N, D)
    ch2d = ch_embed.reshape(N, C)
    sig2d = sig_embed.reshape(N, Ds)

    ww, wc_pad, ws, b = _fuse_params(params, C, wd_embed.dtype)   # tiny, negligible

    # Row tile: multiple of 16 (bf16-safe), clamped to the problem size.  No
    # jnp.pad: Pallas masks the partial tail block's out-of-bounds rows.
    tn = min(_round_up(max(tile_n, 16), 16), _round_up(N, 16))
    if N <= tn and N > 16:
        # Single-block grid would idle one TensorCore on v7x: split in two.
        tn = max(16, _round_up(pl.cdiv(N, 2), 16))
    grid = (pl.cdiv(N, tn),)

    # Scoped-VMEM limit covering the double-buffered activation blocks plus
    # in-kernel f32 temps, clamped to [32 MiB, 64 MiB] (v5e default 16 MiB
    # would be too small for large tiles; v7x physical VMEM is 64 MiB).
    act_bytes = (_block_vmem_bytes(tn, D, wd2d.dtype)
                 + _block_vmem_bytes(tn, C, ch2d.dtype)
                 + _block_vmem_bytes(tn, Ds, sig2d.dtype)
                 + _block_vmem_bytes(tn, C, wd2d.dtype))          # output block
    temp_bytes = 4 * _block_vmem_bytes(tn, 2 * D, jnp.float32)    # pre/gates/fused
    vmem_limit = int(min(max(2 * act_bytes + temp_bytes + (4 << 20), 32 << 20),
                         64 << 20))

    out2d = pl.pallas_call(
        _compose_kernel,
        out_shape=jax.ShapeDtypeStruct((N, C), wd_embed.dtype),
        grid_spec=pl.GridSpec(
            grid=grid,
            in_specs=[
                pl.BlockSpec((tn, D), lambda i: (i, 0)),       # wd
                pl.BlockSpec((tn, C), lambda i: (i, 0)),       # ch (full)
                pl.BlockSpec((tn, Ds), lambda i: (i, 0)),      # sig
                pl.BlockSpec((D, 2 * D), lambda i: (0, 0)),    # fused wd weights
                pl.BlockSpec((C, 2 * D), lambda i: (0, 0)),    # fused ch weights (zero-padded)
                pl.BlockSpec((Ds, 2 * D), lambda i: (0, 0)),   # fused sig weights
                pl.BlockSpec((1, 2 * D), lambda i: (0, 0)),    # fused bias
            ],
            out_specs=pl.BlockSpec((tn, C), lambda i: (i, 0)),
        ),
        compiler_params=pltpu.CompilerParams(
            dimension_semantics=("parallel",),
            vmem_limit_bytes=vmem_limit),
    )(wd2d, ch2d, sig2d, ww, wc_pad, ws, b)

    return out2d.reshape(B, S, C)


def embed_compose_reference(wd_embed, ch_embed, sig_embed, params):
    """Pure-JAX reference for correctness checking (f32 math)."""
    D = wd_embed.shape[-1]
    wd = wd_embed.astype(jnp.float32)
    ch = ch_embed.astype(jnp.float32)
    sig = sig_embed.astype(jnp.float32)
    ch_left = ch[..., :D]
    ch_right = ch[..., D:]
    pre_w = (wd @ params["ww0"] + ch_left @ params["wc0"]
             + sig @ params["ws0"] + params["b0"][0])
    pre_c = (wd @ params["ww1"] + ch_left @ params["wc1"]
             + sig @ params["ws1"] + params["b1"][0])
    gate_w = jax.nn.sigmoid(pre_w)
    gate_c = jax.nn.sigmoid(pre_c)
    embed = gate_w * wd + gate_c * ch_left
    return jnp.concatenate([embed, ch_right], axis=-1)


def init_params(key, wd_embed_dim, sig_embed_dim=5):
    """Deterministic synthetic params. Weights stored pre-transposed (in, out);
    biases combined per gate: b = b_wd + b_ch + b_sig, shape (1, D)."""
    D, Ds = wd_embed_dim, sig_embed_dim
    keys = jax.random.split(key, 12)

    def lin_w(k, fan_in, shape):
        bound = 1.0 / np.sqrt(fan_in)
        return jax.random.uniform(k, shape, jnp.float32, -bound, bound)

    # nn.Linear(in, out): weight (out, in) -> stored transposed as (in, out).
    ww0 = lin_w(keys[0], D, (D, D)); wc0 = lin_w(keys[1], D, (D, D)); ws0 = lin_w(keys[2], Ds, (Ds, D))
    ww1 = lin_w(keys[3], D, (D, D)); wc1 = lin_w(keys[4], D, (D, D)); ws1 = lin_w(keys[5], Ds, (Ds, D))
    b0 = (lin_w(keys[6], D, (D,)) + lin_w(keys[7], D, (D,)) + lin_w(keys[8], Ds, (D,)))[None, :]
    b1 = (lin_w(keys[9], D, (D,)) + lin_w(keys[10], D, (D,)) + lin_w(keys[11], Ds, (D,)))[None, :]
    return dict(ww0=ww0, wc0=wc0, ws0=ws0, b0=b0,
                ww1=ww1, wc1=wc1, ws1=ws1, b1=b1)


if __name__ == "__main__":
    wd_dim, ch_dim, sig_dim = 32, 48, 5
    key = jax.random.PRNGKey(0)
    k_wd, k_ch, k_sig, k_par, k2, k3 = jax.random.split(key, 6)
    params = init_params(k_par, wd_dim, sig_dim)

    # Small shapes consistent with the module's forward:
    #   wd_embed (B,S,wd_dim), ch_embed (B,S,ch_dim), sig_embed (B,S,5)
    B, S = 2, 8
    wd_embed = jax.random.normal(k_wd, (B, S, wd_dim), jnp.float32)
    ch_embed = jax.random.normal(k_ch, (B, S, ch_dim), jnp.float32)
    sig_embed = jax.random.normal(k_sig, (B, S, sig_dim), jnp.float32)

    out = embed_compose_forward(wd_embed, ch_embed, sig_embed, params)
    out = jax.block_until_ready(out)
    ref = embed_compose_reference(wd_embed, ch_embed, sig_embed, params)
    assert out.shape == (B, S, ch_dim), out.shape
    np.testing.assert_allclose(np.asarray(out), np.asarray(ref), atol=1e-4, rtol=1e-4)

    # Tail-masking / multi-step-grid check: N = 21 rows with a 16-row tile
    # (grid of 2, partial last block) -> verifies the masked OOB tail stores.
    B2, S2 = 3, 7
    ks = jax.random.split(k2, 3)
    wd2 = jax.random.normal(ks[0], (B2, S2, wd_dim), jnp.float32)
    ch2 = jax.random.normal(ks[1], (B2, S2, ch_dim), jnp.float32)
    sg2 = jax.random.normal(ks[2], (B2, S2, sig_dim), jnp.float32)
    out2 = jax.block_until_ready(
        embed_compose_forward(wd2, ch2, sg2, params, tile_n=16))
    ref2 = embed_compose_reference(wd2, ch2, sg2, params)
    np.testing.assert_allclose(np.asarray(out2), np.asarray(ref2), atol=1e-4, rtol=1e-4)

    # bf16 activation path (halves HBM bytes; gate math still f32 in-kernel).
    B3, S3 = 4, 64
    ks3 = jax.random.split(k3, 3)
    wd3 = jax.random.normal(ks3[0], (B3, S3, wd_dim), jnp.bfloat16)
    ch3 = jax.random.normal(ks3[1], (B3, S3, ch_dim), jnp.bfloat16)
    sg3 = jax.random.normal(ks3[2], (B3, S3, sig_dim), jnp.bfloat16)
    out3 = jax.block_until_ready(embed_compose_forward(wd3, ch3, sg3, params))
    ref3 = embed_compose_reference(wd3, ch3, sg3, params)
    np.testing.assert_allclose(np.asarray(out3, dtype=np.float32),
                               np.asarray(ref3), atol=1e-1, rtol=1e-1)

    print("KERNEL_OK")
</pallas_src>

<mosaic_0001>
module attributes {stable_mosaic.version = 11 : i64} {
  func.func @_compose_kernel(%arg0: i32, %arg1: memref<16x32xf32, #tpu.memory_space<vmem>>, %arg2: memref<16x48xf32, #tpu.memory_space<vmem>>, %arg3: memref<16x5xf32, #tpu.memory_space<vmem>>, %arg4: memref<32x64xf32, #tpu.memory_space<vmem>>, %arg5: memref<48x64xf32, #tpu.memory_space<vmem>>, %arg6: memref<5x64xf32, #tpu.memory_space<vmem>>, %arg7: memref<1x64xf32, #tpu.memory_space<vmem>>, %arg8: memref<16x48xf32, #tpu.memory_space<vmem>>) attributes {dimension_semantics = [#tpu.dimension_semantics<parallel>], iteration_bounds = array<i64: 1>, scalar_prefetch = 0 : i64, scratch_operands = 0 : i64, tpu.core_type = #tpu.core_type<tc>, window_params = [{transform_indices = @transform_0, window_bounds = array<i64: 16, 32>}, {transform_indices = @transform_1, window_bounds = array<i64: 16, 48>}, {transform_indices = @transform_2, window_bounds = array<i64: 16, 5>}, {pipeline_mode = #tpu.pipeline_mode<synchronous>, transform_indices = @transform_3, window_bounds = array<i64: 32, 64>}, {pipeline_mode = #tpu.pipeline_mode<synchronous>, transform_indices = @transform_4, window_bounds = array<i64: 48, 64>}, {pipeline_mode = #tpu.pipeline_mode<synchronous>, transform_indices = @transform_5, window_bounds = array<i64: 5, 64>}, {pipeline_mode = #tpu.pipeline_mode<synchronous>, transform_indices = @transform_6, window_bounds = array<i64: 1, 64>}, {transform_indices = @transform_7, window_bounds = array<i64: 16, 48>}]} {
    %c0 = arith.constant 0 : index
    %c0_0 = arith.constant 0 : index
    %0 = vector.load %arg1[%c0, %c0_0] : memref<16x32xf32, #tpu.memory_space<vmem>>, vector<16x32xf32>
    %c0_1 = arith.constant 0 : index
    %c0_2 = arith.constant 0 : index
    %1 = vector.load %arg2[%c0_1, %c0_2] : memref<16x48xf32, #tpu.memory_space<vmem>>, vector<16x48xf32>
    %c0_3 = arith.constant 0 : index
    %c0_4 = arith.constant 0 : index
    %2 = vector.load %arg4[%c0_3, %c0_4] : memref<32x64xf32, #tpu.memory_space<vmem>>, vector<32x64xf32>
    %cst = arith.constant dense<0.000000e+00> : vector<16x64xf32>
    %3 = tpu.matmul %0, %2, %cst {dimension_numbers = #tpu.dot_dimension_numbers<[1], [0], [0], [1], [0, 0, 1, 1], [], []>} : vector<16x32xf32>, vector<32x64xf32>, vector<16x64xf32> -> vector<16x64xf32>
    %c0_5 = arith.constant 0 : index
    %c0_6 = arith.constant 0 : index
    %4 = vector.load %arg5[%c0_5, %c0_6] : memref<48x64xf32, #tpu.memory_space<vmem>>, vector<48x64xf32>
    %cst_7 = arith.constant dense<0.000000e+00> : vector<16x64xf32>
    %5 = tpu.matmul %1, %4, %cst_7 {dimension_numbers = #tpu.dot_dimension_numbers<[1], [0], [0], [1], [0, 0, 1, 1], [], []>} : vector<16x48xf32>, vector<48x64xf32>, vector<16x64xf32> -> vector<16x64xf32>
    %6 = arith.addf %3, %5 : vector<16x64xf32>
    %c0_8 = arith.constant 0 : index
    %c0_9 = arith.constant 0 : index
    %7 = vector.load %arg3[%c0_8, %c0_9] : memref<16x5xf32, #tpu.memory_space<vmem>>, vector<16x5xf32>
    %c0_10 = arith.constant 0 : index
    %c0_11 = arith.constant 0 : index
    %8 = vector.load %arg6[%c0_10, %c0_11] : memref<5x64xf32, #tpu.memory_space<vmem>>, vector<5x64xf32>
    %cst_12 = arith.constant dense<0.000000e+00> : vector<16x64xf32>
    %9 = tpu.matmul %7, %8, %cst_12 {dimension_numbers = #tpu.dot_dimension_numbers<[1], [0], [0], [1], [0, 0, 1, 1], [], []>} : vector<16x5xf32>, vector<5x64xf32>, vector<16x64xf32> -> vector<16x64xf32>
    %10 = arith.addf %6, %9 : vector<16x64xf32>
    %c0_13 = arith.constant 0 : index
    %c0_14 = arith.constant 0 : index
    %11 = vector.load %arg7[%c0_13, %c0_14] : memref<1x64xf32, #tpu.memory_space<vmem>>, vector<1x64xf32>
    %12 = vector.broadcast %11 : vector<1x64xf32> to vector<16x64xf32>
    %13 = arith.addf %10, %12 : vector<16x64xf32>
    %14 = arith.negf %13 : vector<16x64xf32>
    %15 = math.exp %14 : vector<16x64xf32>
    %cst_15 = arith.constant 1.000000e+00 : f32
    %16 = vector.broadcast %cst_15 : f32 to vector<16x64xf32>
    %17 = arith.addf %16, %15 : vector<16x64xf32>
    %18 = arith.divf %16, %17 : vector<16x64xf32>
    %19 = vector.extract_strided_slice %18 {offsets = [0, 0], sizes = [16, 32], strides = [1, 1]} : vector<16x64xf32> to vector<16x32xf32>
    %20 = vector.extract_strided_slice %18 {offsets = [0, 32], sizes = [16, 32], strides = [1, 1]} : vector<16x64xf32> to vector<16x32xf32>
    %21 = arith.mulf %19, %0 : vector<16x32xf32>
    %22 = vector.extract_strided_slice %1 {offsets = [0, 0], sizes = [16, 32], strides = [1, 1]} : vector<16x48xf32> to vector<16x32xf32>
    %23 = arith.mulf %20, %22 : vector<16x32xf32>
    %24 = arith.addf %21, %23 : vector<16x32xf32>
    %c0_16 = arith.constant 0 : index
    %c0_17 = arith.constant 0 : index
    %25 = vector.load %arg8[%c0_16, %c0_17] : memref<16x48xf32, #tpu.memory_space<vmem>>, vector<16x32xf32>
    tpu.vector_store %arg8[%c0_16, %c0_17], %24 {strides = array<i32>} : memref<16x48xf32, #tpu.memory_space<vmem>>, vector<16x32xf32>,
    %26 = vector.extract_strided_slice %1 {offsets = [0, 32], sizes = [16, 16], strides = [1, 1]} : vector<16x48xf32> to vector<16x16xf32>
    %c0_18 = arith.constant 0 : index
    %c32 = arith.constant 32 : index
    %27 = vector.load %arg8[%c0_18, %c32] : memref<16x48xf32, #tpu.memory_space<vmem>>, vector<16x16xf32>
    tpu.vector_store %arg8[%c0_18, %c32], %26 {strides = array<i32>} : memref<16x48xf32, #tpu.memory_space<vmem>>, vector<16x16xf32>,
    return
  }
  func.func @transform_0(%arg0: i32) -> (i32, i32) {
    %c0_i32 = arith.constant 0 : i32
    %c0_i32_0 = arith.constant 0 : i32
    return %arg0, %c0_i32 : i32, i32
  }
  func.func @transform_1(%arg0: i32) -> (i32, i32) {
    %c0_i32 = arith.constant 0 : i32
    %c0_i32_0 = arith.constant 0 : i32
    return %arg0, %c0_i32 : i32, i32
  }
  func.func @transform_2(%arg0: i32) -> (i32, i32) {
    %c0_i32 = arith.constant 0 : i32
    %c0_i32_0 = arith.constant 0 : i32
    return %arg0, %c0_i32 : i32, i32
  }
  func.func @transform_3(%arg0: i32) -> (i32, i32) {
    %c0_i32 = arith.constant 0 : i32
    %c0_i32_0 = arith.constant 0 : i32
    %c0_i32_1 = arith.constant 0 : i32
    return %c0_i32, %c0_i32_0 : i32, i32
  }
  func.func @transform_4(%arg0: i32) -> (i32, i32) {
    %c0_i32 = arith.constant 0 : i32
    %c0_i32_0 = arith.constant 0 : i32
    %c0_i32_1 = arith.constant 0 : i32
    return %c0_i32, %c0_i32_0 : i32, i32
  }
  func.func @transform_5(%arg0: i32) -> (i32, i32) {
    %c0_i32 = arith.constant 0 : i32
    %c0_i32_0 = arith.constant 0 : i32
    %c0_i32_1 = arith.constant 0 : i32
    return %c0_i32, %c0_i32_0 : i32, i32
  }
  func.func @transform_6(%arg0: i32) -> (i32, i32) {
    %c0_i32 = arith.constant 0 : i32
    %c0_i32_0 = arith.constant 0 : i32
    %c0_i32_1 = arith.constant 0 : i32
    return %c0_i32, %c0_i32_0 : i32, i32
  }
  func.func @transform_7(%arg0: i32) -> (i32, i32) {
    %c0_i32 = arith.constant 0 : i32
    %c0_i32_0 = arith.constant 0 : i32
    return %arg0, %c0_i32 : i32, i32
  }
}

</mosaic_0001>

<llo_original>
// kernel: tpu_custom_call.1
$region0: #{tpu_custom_call.1}
  #allocation0 [shape = 'u32[]', space=smem, size = 0x4, offset = 0x4, fixed_abs, tag = 'smem constant byte address 0x4 - core index']
  #allocation1 [shape = 'u32[144,128]{1,0:T(1,128)}', space=vmem, size = 0x12000, scoped, tag = 'internal scratch']
  %s0 = inlined_call_operand.vmem [shape: f32[16,32], index: 0, kind: input, shape index: {}]
  %s1 = inlined_call_operand.hbm [shape: f32[16,48], index: 1, kind: input, shape index: {}]
  %s2 = inlined_call_operand.vmem [shape: f32[16,5], index: 2, kind: input, shape index: {}]
  %s3 = inlined_call_operand.hbm [shape: f32[32,64], index: 3, kind: input, shape index: {}]
  %s4 = inlined_call_operand.hbm [shape: f32[48,64], index: 4, kind: input, shape index: {}]
  %s5 = inlined_call_operand.vmem [shape: f32[5,64], index: 5, kind: input, shape index: {}]
  %s6 = inlined_call_operand.vmem [shape: f32[1,64], index: 6, kind: input, shape index: {}]
  %s7 = inlined_call_operand.hbm [shape: f32[16,48], index: 7, kind: output, shape index: {}]
  %s8 = sld [smem:[#allocation0]]
  $region50: #{tpu_custom_call.1} parent=0
    _
  %s10 = ssub.s32 1, %s8
  %s11 = scalar_select 0, %s10, %s8
  $region1: #{tpu_custom_call.1} parent=0
    #allocation2 [shape = 'u8[8192]{0}', space=vmem, size = 0x2000, scoped, tag = 'input window, operand 1, single buffered']
    #allocation3 [shape = 's32[1]{0}', space=sflag, size = 0x4, scoped, tag = 'scoped memory for tpu_custom_call.1']
    #allocation4 [shape = 's32[1]{0}', space=sflag, size = 0x4, scoped, tag = 'scoped memory for tpu_custom_call.1']
    #allocation5 [shape = 'u8[16384]{0}', space=vmem, size = 0x4000, scoped, tag = 'input window, operand 3, single buffered']
    #allocation6 [shape = 's32[1]{0}', space=sflag, size = 0x4, scoped, tag = 'scoped memory for tpu_custom_call.1']
    #allocation7 [shape = 'u8[24576]{0}', space=vmem, size = 0x6000, scoped, tag = 'input window, operand 4, single buffered']
    #allocation8 [shape = 'u8[8192]{0}', space=vmem, size = 0x2000, scoped, tag = 'output window, operand 0, single buffered']
    %12 = vsyncpa [#allocation3], 0
    %13 = vsyncpa [#allocation6], 0
    %14 = vsyncpa [#allocation4], 0
    // Predicated region
    $region2: #{tpu_custom_call.1} parent=1 // pred_check
      _
    $region3: #{tpu_custom_call.1} parent=1 // pred_check_branch
      %16 = sbr.rel (0) target = $region5
    $region4: #{tpu_custom_call.1} parent=1 // pred_region
      _
    $region5: #{tpu_custom_call.1} parent=1 // pred_fallthru
      _
    // Predicated region
    $region6: #{tpu_custom_call.1} parent=1 // pred_check
      _
    $region7: #{tpu_custom_call.1} parent=1 // pred_check_branch
      %18 = sbr.rel (0) target = $region9
    $region8: #{tpu_custom_call.1} parent=1 // pred_region
      %s20 = ssub.s32 256, 256
      %21 = vsyncadd [#allocation3], %s20
      %s22 = sshll.u32 [#allocation2], 4
      %s23 = int_to_ptr.vmem [resolvable:$true] %s22
      %28 = dma.hbm_to_vmem [thread:$0]  %s1, 256, %s23, [#allocation3], 128, 128, 8
    $region9: #{tpu_custom_call.1} parent=1 // pred_fallthru
      _
    // Predicated region
    $region10: #{tpu_custom_call.1} parent=1 // pred_check
      _
    $region11: #{tpu_custom_call.1} parent=1 // pred_check_branch
      %30 = sbr.rel (0) target = $region13
    $region12: #{tpu_custom_call.1} parent=1 // pred_region
      _
    $region13: #{tpu_custom_call.1} parent=1 // pred_fallthru
      _
    // Predicated region
    $region14: #{tpu_custom_call.1} parent=1 // pred_check
      _
    $region15: #{tpu_custom_call.1} parent=1 // pred_check_branch
      %32 = sbr.rel (0) target = $region17
    $region16: #{tpu_custom_call.1} parent=1 // pred_region
      %s34 = ssub.s32 512, 512
      %35 = vsyncadd [#allocation6], %s34
      %s36 = sshll.u32 [#allocation5], 4
      %s37 = int_to_ptr.vmem [resolvable:$true] %s36
      %42 = dma.hbm_to_vmem [thread:$0]  %s3, 512, %s37, [#allocation6], 128, 128, 8
    $region17: #{tpu_custom_call.1} parent=1 // pred_fallthru
      _
    // Predicated region
    $region18: #{tpu_custom_call.1} parent=1 // pred_check
      _
    $region19: #{tpu_custom_call.1} parent=1 // pred_check_branch
      %44 = sbr.rel (0) target = $region21
    $region20: #{tpu_custom_call.1} parent=1 // pred_region
      %s46 = ssub.s32 768, 768
      %47 = vsyncadd [#allocation6], %s46
      %s48 = sshll.u32 [#allocation7], 4
      %s49 = int_to_ptr.vmem [resolvable:$true] %s48
      %54 = dma.hbm_to_vmem [thread:$0]  %s4, 768, %s49, [#allocation6], 128, 128, 8
    $region21: #{tpu_custom_call.1} parent=1 // pred_fallthru
      _
    // Predicated region
    $region22: #{tpu_custom_call.1} parent=1 // pred_check
      _
    $region23: #{tpu_custom_call.1} parent=1 // pred_check_branch
      %56 = sbr.rel (0) target = $region25
    $region24: #{tpu_custom_call.1} parent=1 // pred_region
      _
    $region25: #{tpu_custom_call.1} parent=1 // pred_fallthru
      _
    // Predicated region
    $region26: #{tpu_custom_call.1} parent=1 // pred_check
      _
    $region27: #{tpu_custom_call.1} parent=1 // pred_check_branch
      %58 = sbr.rel (0) target = $region29
    $region28: #{tpu_custom_call.1} parent=1 // pred_region
      _
    $region29: #{tpu_custom_call.1} parent=1 // pred_fallthru
      _
    // Predicated region
    $region30: #{tpu_custom_call.1} parent=1 // pred_check
      _
    $region31: #{tpu_custom_call.1} parent=1 // pred_check_branch
      %60 = sbr.rel (0) target = $region33
    $region32: #{tpu_custom_call.1} parent=1 // pred_region
      %61 = dma.done [#allocation3], 256
    $region33: #{tpu_custom_call.1} parent=1 // pred_fallthru
      _
    // Predicated region
    $region34: #{tpu_custom_call.1} parent=1 // pred_check
      _
    $region35: #{tpu_custom_call.1} parent=1 // pred_check_branch
      %63 = sbr.rel (0) target = $region37
    $region36: #{tpu_custom_call.1} parent=1 // pred_region
      %64 = dma.done [#allocation6], 512
    $region37: #{tpu_custom_call.1} parent=1 // pred_fallthru
      _
    // Predicated region
    $region38: #{tpu_custom_call.1} parent=1 // pred_check
      _
    $region39: #{tpu_custom_call.1} parent=1 // pred_check_branch
      %66 = sbr.rel (0) target = $region41
    $region40: #{tpu_custom_call.1} parent=1 // pred_region
      %67 = dma.done [#allocation6], 768
    $region41: #{tpu_custom_call.1} parent=1 // pred_fallthru
      _
    %v68 = vld [vmem:[%s0] sm:$0xff]
    %v69 = vld [vmem:[%s0 + $0x8] sm:$0xff]
    %v70 = vld [vmem:[#allocation2] sm:$0xff]
    %v71 = vld [vmem:[#allocation2 + $0x8] sm:$0xff]
    %v72 = vld [vmem:[#allocation5] sm:$0xff]
    %v73 = vld [vmem:[#allocation5 + $0x8] sm:$0xff]
    %v74 = vld [vmem:[#allocation5 + $0x10] sm:$0xff]
    %v75 = vld [vmem:[#allocation5 + $0x18] sm:$0xff]
    %v76 = vld [vmem:[#allocation7] sm:$0xff]
    %v77 = vld [vmem:[#allocation7 + $0x8] sm:$0xff]
    %v78 = vld [vmem:[#allocation7 + $0x10] sm:$0xff]
    %v79 = vld [vmem:[#allocation7 + $0x18] sm:$0xff]
    %v80 = vld [vmem:[#allocation7 + $0x20] sm:$0xff]
    %v81 = vld [vmem:[#allocation7 + $0x28] sm:$0xff]
    %vm82 = vcmask 392192
    %v84 = vsel %vm82, %v70, 0
    %v87 = vsel %vm82, %v71, 0
    %89 = vmatprep.subr.mxu0 0.0
    %90 = vmatpush1.msra.mxu0 0.0
    %91 = vmatprep.subr.mxu0 0.0
    %92 = vmatpush1.msra.mxu0 0.0
    %93 = vmatprep.subr.mxu0 0.0
    %94 = vmatpush1.msra.mxu0 0.0
    %95 = vmatprep.subr.mxu0 0.0
    %96 = vmatpush1.msra.mxu0 0.0
    %97 = vmatprep.subr.mxu0 0.0
    %98 = vmatpush1.msra.mxu0 0.0
    %99 = vmatprep.subr.mxu0 0.0
    %100 = vmatpush1.msra.mxu0 0.0
    %101 = vmatprep.subr.mxu0 0.0
    %102 = vmatpush1.msra.mxu0 0.0
    %103 = vmatprep.subr.mxu0 0.0
    %104 = vmatpush1.msra.mxu0 0.0
    %105 = vmatprep.subr.mxu0 0.0
    %106 = vmatpush1.msra.mxu0 0.0
    %107 = vmatprep.subr.mxu0 0.0
    %108 = vmatpush1.msra.mxu0 0.0
    %109 = vmatprep.subr.mxu0 0.0
    %110 = vmatpush1.msra.mxu0 %v81
    %111 = vmatprep.subr.mxu0 0.0
    %112 = vmatpush1.msra.mxu0 %v80
    %113 = vmatprep.subr.mxu0 0.0
    %114 = vmatpush1.msra.mxu0 %v79
    %115 = vmatprep.subr.mxu0 0.0
    %116 = vmatpush1.msra.mxu0 %v78
    %117 = vmatprep.subr.mxu0 0.0
    %118 = vmatpush1.msra.mxu0 %v77
    %119 = vmatprep.subr.mxu0 0.0
    %120 = vmatpush1.msra.mxu0 %v76
    %121 = vmatprep.subr.mxu0 0.0
    %122 = vmatpush2.msra.mxu0 0.0
    %123 = vmatprep.subr.mxu0 0.0
    %124 = vmatpush2.msra.mxu0 0.0
    %125 = vmatprep.subr.mxu0 0.0
    %126 = vmatpush2.msra.mxu0 0.0
    %127 = vmatprep.subr.mxu0 0.0
    %128 = vmatpush2.msra.mxu0 0.0
    %129 = vmatprep.subr.mxu0 0.0
    %130 = vmatpush2.msra.mxu0 0.0
    %131 = vmatprep.subr.mxu0 0.0
    %132 = vmatpush2.msra.mxu0 0.0
    %133 = vmatprep.subr.mxu0 0.0
    %134 = vmatpush2.msra.mxu0 0.0
    %135 = vmatprep.subr.mxu0 0.0
    %136 = vmatpush2.msra.mxu0 0.0
    %137 = vmatprep.subr.mxu0 0.0
    %138 = vmatpush2.msra.mxu0 0.0
    %139 = vmatprep.subr.mxu0 0.0
    %140 = vmatpush2.msra.mxu0 0.0
    %141 = vmatprep.subr.mxu0 0.0
    %142 = vmatpush2.msra.mxu0 0.0
    %143 = vmatprep.subr.mxu0 0.0
    %144 = vmatpush2.msra.mxu0 0.0
    %145 = vmatprep.subr.mxu0 0.0
    %146 = vmatpush2.msra.mxu0 0.0
    %147 = vmatprep.subr.mxu0 0.0
    %148 = vmatpush2.msra.mxu0 0.0
    %149 = vmatprep.subr.mxu0 0.0
    %150 = vmatpush2.msra.mxu0 0.0
    %151 = vmatprep.subr.mxu0 0.0
    %152 = vmatpush2.msra.mxu0 0.0
    %153 = vmatprep.mubr.f32.mxu0 0.0
    %154 = vmatmul.mubr.f32.gmra.mxu0 %v84
    %v155 = vpop.f32.mrf.mxu0
    %v156 = vadd.f32 0.0, %v155
    %v157 = vpop.f32.mrf.mxu0
    %158 = vmatprep.mubr.f32.mxu0 0.0
    %159 = vmatmul.mubr.f32.gmra.mxu0 %v87
    %v160 = vpop.f32.mrf.mxu0
    %v161 = vadd.f32 0.0, %v160
    %v162 = vpop.f32.mrf.mxu0
    %163 = vdwg.mxu0
    %vm164 = vcmask 261120
    %v166 = vsel %vm164, %v68, 0
    %v169 = vsel %vm164, %v69, 0
    %171 = vmatprep.subr.mxu0 0.0
    %172 = vmatpush1.msra.mxu0 0.0
    %173 = vmatprep.subr.mxu0 0.0
    %174 = vmatpush1.msra.mxu0 0.0
    %175 = vmatprep.subr.mxu0 0.0
    %176 = vmatpush1.msra.mxu0 0.0
    %177 = vmatprep.subr.mxu0 0.0
    %178 = vmatpush1.msra.mxu0 0.0
    %179 = vmatprep.subr.mxu0 0.0
    %180 = vmatpush1.msra.mxu0 0.0
    %181 = vmatprep.subr.mxu0 0.0
    %182 = vmatpush1.msra.mxu0 0.0
    %183 = vmatprep.subr.mxu0 0.0
    %184 = vmatpush1.msra.mxu0 0.0
    %185 = vmatprep.subr.mxu0 0.0
    %186 = vmatpush1.msra.mxu0 0.0
    %187 = vmatprep.subr.mxu0 0.0
    %188 = vmatpush1.msra.mxu0 0.0
    %189 = vmatprep.subr.mxu0 0.0
    %190 = vmatpush1.msra.mxu0 0.0
    %191 = vmatprep.subr.mxu0 0.0
    %192 = vmatpush1.msra.mxu0 0.0
    %193 = vmatprep.subr.mxu0 0.0
    %194 = vmatpush1.msra.mxu0 0.0
    %195 = vmatprep.subr.mxu0 0.0
    %196 = vmatpush1.msra.mxu0 %v75
    %197 = vmatprep.subr.mxu0 0.0
    %198 = vmatpush1.msra.mxu0 %v74
    %199 = vmatprep.subr.mxu0 0.0
    %200 = vmatpush1.msra.mxu0 %v73
    %201 = vmatprep.subr.mxu0 0.0
    %202 = vmatpush1.msra.mxu0 %v72
    %203 = vmatprep.subr.mxu0 0.0
    %204 = vmatpush2.msra.mxu0 0.0
    %205 = vmatprep.subr.mxu0 0.0
    %206 = vmatpush2.msra.mxu0 0.0
    %207 = vmatprep.subr.mxu0 0.0
    %208 = vmatpush2.msra.mxu0 0.0
    %209 = vmatprep.subr.mxu0 0.0
    %210 = vmatpush2.msra.mxu0 0.0
    %211 = vmatprep.subr.mxu0 0.0
    %212 = vmatpush2.msra.mxu0 0.0
    %213 = vmatprep.subr.mxu0 0.0
    %214 = vmatpush2.msra.mxu0 0.0
    %215 = vmatprep.subr.mxu0 0.0
    %216 = vmatpush2.msra.mxu0 0.0
    %217 = vmatprep.subr.mxu0 0.0
    %218 = vmatpush2.msra.mxu0 0.0
    %219 = vmatprep.subr.mxu0 0.0
    %220 = vmatpush2.msra.mxu0 0.0
    %221 = vmatprep.subr.mxu0 0.0
    %222 = vmatpush2.msra.mxu0 0.0
    %223 = vmatprep.subr.mxu0 0.0
    %224 = vmatpush2.msra.mxu0 0.0
    %225 = vmatprep.subr.mxu0 0.0
    %226 = vmatpush2.msra.mxu0 0.0
    %227 = vmatprep.subr.mxu0 0.0
    %228 = vmatpush2.msra.mxu0 0.0
    %229 = vmatprep.subr.mxu0 0.0
    %230 = vmatpush2.msra.mxu0 0.0
    %231 = vmatprep.subr.mxu0 0.0
    %232 = vmatpush2.msra.mxu0 0.0
    %233 = vmatprep.subr.mxu0 0.0
    %234 = vmatpush2.msra.mxu0 0.0
    %235 = vmatprep.mubr.f32.mxu0 0.0
    %236 = vmatmul.mubr.f32.gmra.mxu0 %v166
    %v237 = vpop.f32.mrf.mxu0
    %v238 = vadd.f32 %v156, %v237
    %v239 = vpop.f32.mrf.mxu0
    %240 = vmatprep.mubr.f32.mxu0 0.0
    %241 = vmatmul.mubr.f32.gmra.mxu0 %v169
    %v242 = vpop.f32.mrf.mxu0
    %v243 = vadd.f32 %v161, %v242
    %v244 = vpop.f32.mrf.mxu0
    %245 = vdwg.mxu0
    %v246 = vld [vmem:[%s2] sm:$0xff]
    %v247 = vld [vmem:[%s2 + $0x8] sm:$0xff]
    %v248 = vld [vmem:[%s5] sm:$0x1f]
    %vm249 = vcmask 39936
    %v251 = vsel %vm249, %v246, 0
    %v254 = vsel %vm249, %v247, 0
    %vm256 = vcmask 1044480
    %v258 = vsel %vm256, %v248, 0
    %260 = vmatprep.subr.mxu0 0.0
    %261 = vmatpush1.msra.mxu0 0.0
    %262 = vmatprep.subr.mxu0 0.0
    %263 = vmatpush1.msra.mxu0 0.0
    %264 = vmatprep.subr.mxu0 0.0
    %265 = vmatpush1.msra.mxu0 0.0
    %266 = vmatprep.subr.mxu0 0.0
    %267 = vmatpush1.msra.mxu0 0.0
    %268 = vmatprep.subr.mxu0 0.0
    %269 = vmatpush1.msra.mxu0 0.0
    %270 = vmatprep.subr.mxu0 0.0
    %271 = vmatpush1.msra.mxu0 0.0
    %272 = vmatprep.subr.mxu0 0.0
    %273 = vmatpush1.msra.mxu0 0.0
    %274 = vmatprep.subr.mxu0 0.0
    %275 = vmatpush1.msra.mxu0 0.0
    %276 = vmatprep.subr.mxu0 0.0
    %277 = vmatpush1.msra.mxu0 0.0
    %278 = vmatprep.subr.mxu0 0.0
    %279 = vmatpush1.msra.mxu0 0.0
    %280 = vmatprep.subr.mxu0 0.0
    %281 = vmatpush1.msra.mxu0 0.0
    %282 = vmatprep.subr.mxu0 0.0
    %283 = vmatpush1.msra.mxu0 0.0
    %284 = vmatprep.subr.mxu0 0.0
    %285 = vmatpush1.msra.mxu0 0.0
    %286 = vmatprep.subr.mxu0 0.0
    %287 = vmatpush1.msra.mxu0 0.0
    %288 = vmatprep.subr.mxu0 0.0
    %289 = vmatpush1.msra.mxu0 0.0
    %290 = vmatprep.subr.mxu0 0.0
    %291 = vmatpush1.msra.mxu0 %v258
    %292 = vmatprep.subr.mxu0 0.0
    %293 = vmatpush2.msra.mxu0 0.0
    %294 = vmatprep.subr.mxu0 0.0
    %295 = vmatpush2.msra.mxu0 0.0
    %296 = vmatprep.subr.mxu0 0.0
    %297 = vmatpush2.msra.mxu0 0.0
    %298 = vmatprep.subr.mxu0 0.0
    %299 = vmatpush2.msra.mxu0 0.0
    %300 = vmatprep.subr.mxu0 0.0
    %301 = vmatpush2.msra.mxu0 0.0
    %302 = vmatprep.subr.mxu0 0.0
    %303 = vmatpush2.msra.mxu0 0.0
    %304 = vmatprep.subr.mxu0 0.0
    %305 = vmatpush2.msra.mxu0 0.0
    %306 = vmatprep.subr.mxu0 0.0
    %307 = vmatpush2.msra.mxu0 0.0
    %308 = vmatprep.subr.mxu0 0.0
    %309 = vmatpush2.msra.mxu0 0.0
    %310 = vmatprep.subr.mxu0 0.0
    %311 = vmatpush2.msra.mxu0 0.0
    %312 = vmatprep.subr.mxu0 0.0
    %313 = vmatpush2.msra.mxu0 0.0
    %314 = vmatprep.subr.mxu0 0.0
    %315 = vmatpush2.msra.mxu0 0.0
    %316 = vmatprep.subr.mxu0 0.0
    %317 = vmatpush2.msra.mxu0 0.0
    %318 = vmatprep.subr.mxu0 0.0
    %319 = vmatpush2.msra.mxu0 0.0
    %320 = vmatprep.subr.mxu0 0.0
    %321 = vmatpush2.msra.mxu0 0.0
    %322 = vmatprep.subr.mxu0 0.0
    %323 = vmatpush2.msra.mxu0 0.0
    %324 = vmatprep.mubr.f32.mxu0 0.0
    %325 = vmatmul.mubr.f32.gmra.mxu0 %v251
    %v326 = vpop.f32.mrf.mxu0
    %v327 = vadd.f32 0.0, %v326
    %v328 = vpop.f32.mrf.mxu0
    %329 = vmatprep.mubr.f32.mxu0 0.0
    %330 = vmatmul.mubr.f32.gmra.mxu0 %v254
    %v331 = vpop.f32.mrf.mxu0
    %v332 = vadd.f32 0.0, %v331
    %v333 = vpop.f32.mrf.mxu0
    %334 = vdwg.mxu0
    %v335 = vadd.f32 %v238, %v327
    %v336 = vadd.f32 %v243, %v332
    %v337 = vld [vmem:[%s6] sm:$0x1]
    %v339 = vlaneseq
    %v340 = vshrl.u32 %v339, 7
    %v341 = vsub.s32 0, %v340
    %v342 = vrot.slane %v337, %v341
    %v344 = vadd.f32 %v335, %v342
    %v345 = vadd.f32 %v336, %v342
    %v346 = vxor.u32 %v344, 2147483648
    %v347 = vxor.u32 %v345, 2147483648
    %v348 = vmul.f32 %v346, 1.442695
    %v349 = vpow.pop %v348
    %v350 = vmul.f32 %v347, 1.442695
    %v351 = vpow.pop %v350
    %v352 = vadd.f32 %v349, 1.0
    %v353 = vadd.f32 %v351, 1.0
    %v354 = vrcp.pop %v352
    %v355 = vmul.f32 1.0, %v354
    %v356 = vrcp.pop %v353
    %v357 = vmul.f32 1.0, %v356
    %v358 = vmul.f32 %v355, %v68
    %v359 = vmul.f32 %v357, %v69
    %360 = vrot.lane.b32.xlu0 %v70, 32
    %v361 = vpop.permute.xlu0 %360
    %362 = vrot.lane.b32.xlu0 %v71, 32
    %v363 = vpop.permute.xlu0 %362
    %v366 = vmul.f32 %v355, %v361
    %v367 = vmul.f32 %v357, %v363
    %370 = vrot.lane.b32.xlu0 %v366, 96
    %v371 = vpop.permute.xlu0 %370
    %372 = vrot.lane.b32.xlu0 %v367, 96
    %v373 = vpop.permute.xlu0 %372
    %v376 = vadd.f32 %v358, %v371
    %v377 = vadd.f32 %v359, %v373
    %378 = vst.msk [vmem:[#allocation8] sm:$0xff] %vm164, %v376
    %379 = vst.msk [vmem:[#allocation8 + $0x8] sm:$0xff] %vm164, %v377
    %vm380 = vcmask 392448
    %381 = vst.msk [vmem:[#allocation8] sm:$0xff] %vm380, %v70
    %382 = vst.msk [vmem:[#allocation8 + $0x8] sm:$0xff] %vm380, %v71
    // Predicated region
    $region42: #{tpu_custom_call.1} parent=1 // pred_check
      _
    $region43: #{tpu_custom_call.1} parent=1 // pred_check_branch
      %384 = sbr.rel (0) target = $region45
    $region44: #{tpu_custom_call.1} parent=1 // pred_region
      %s386 = ssub.s32 256, 256
      %387 = vsyncadd [#allocation4], %s386
      %s388 = sshll.u32 [#allocation8], 4
      %s389 = int_to_ptr.vmem [resolvable:$true] %s388
      %394 = dma.vmem_to_hbm [thread:$0]  %s389, 256, %s7, [#allocation4], 128, 128, 8
    $region45: #{tpu_custom_call.1} parent=1 // pred_fallthru
      _
    // Predicated region
    $region46: #{tpu_custom_call.1} parent=1 // pred_check
      _
    $region47: #{tpu_custom_call.1} parent=1 // pred_check_branch
      %396 = sbr.rel (0) target = $region49
    $region48: #{tpu_custom_call.1} parent=1 // pred_region
      %397 = dma.done [#allocation4], 256
    $region49: #{tpu_custom_call.1} parent=1 // pred_fallthru
      _
    %398 = vsyncpa [#allocation3], 1
    %399 = vsyncpa [#allocation6], 1
    %400 = vsyncpa [#allocation4], 1

</llo_original>
